<compile_context>
chip_gen: v6e
topology: v6e:2x2x1
jax: 0.10.0
libtpu: 0.0.40
codegen_flags: <defaults>
</compile_context>

<pallas_src>
from functools import partial
import math

import jax
import jax.numpy as jnp
from jax.experimental import pallas as pl
from jax.experimental.pallas import tpu as pltpu

_LANE = 128
_TILE_ROWS = 1024  # 1024 x 128 x 4B = 512 KiB per f32 buffer; ~2 MiB double-buffered in+out


def _hash_u32(x):
    """Murmur3-style 32-bit finalizer: good avalanche, pure integer VPU ops."""
    x = x ^ (x >> 16)
    x = x * jnp.uint32(0x7FEB352D)
    x = x ^ (x >> 15)
    x = x * jnp.uint32(0x846CA68B)
    x = x ^ (x >> 16)
    return x


def _uniform_from_bits(bits, offset):
    """Top 24 bits of a uint32 -> float32 uniform in [offset/2^24, 1 + (offset-1)/2^24)."""
    hi = (bits >> 8).astype(jnp.int32).astype(jnp.float32)  # exact, < 2^24
    return (hi + jnp.float32(offset)) * jnp.float32(1.0 / 16777216.0)


def _gaussian_noise_kernel(seed_ref, x_ref, o_ref, *, std, tile_rows):
    r, c = x_ref.shape
    i = pl.program_id(0)

    # Counter-based (stateless) PRNG: each element of the logical slab gets a
    # unique 32-bit counter, so every grid tile draws independent noise.
    row = jax.lax.broadcasted_iota(jnp.int32, (r, c), 0)
    col = jax.lax.broadcasted_iota(jnp.int32, (r, c), 1)
    idx = ((i * tile_rows + row) * c + col).astype(jnp.uint32)
    key = seed_ref[0].astype(jnp.uint32) * jnp.uint32(0x9E3779B9)

    # Two disjoint counter streams -> two independent uniforms per element.
    h0 = _hash_u32(idx + key)
    h1 = _hash_u32(idx + key + jnp.uint32(0x7F4A7C15))
    u1 = _uniform_from_bits(h0, 1.0)  # in (0, 1]  -> log() is safe
    u2 = _uniform_from_bits(h1, 0.0)  # in [0, 1)

    # Box-Muller: exact N(0, 1) samples (log/sqrt/cos ride the EUP slot,
    # overlapping with the HBM DMAs of this mem-bound kernel).
    z = jnp.sqrt(-2.0 * jnp.log(u1)) * jnp.cos(jnp.float32(2.0 * math.pi) * u2)
    noise = z * jnp.float32(std)

    o_ref[...] = (x_ref[...].astype(jnp.float32) + noise).astype(o_ref.dtype)


def gaussian_noise(x, seed, std):
    """Equivalent of GaussianNoise.forward: returns x + noise, noise ~ N(0, std)."""
    orig_shape = x.shape
    orig_dtype = x.dtype
    n = x.size

    flat = x.reshape(-1)
    padded = False
    if n % _LANE != 0:
        # Rare ragged case: pad up to a whole number of 128-lane rows.
        # TODO(synk): handle the ragged tail with an in-kernel masked store
        # instead of this pad/slice round-trip.
        flat = jnp.pad(flat, (0, (-n) % _LANE))
        padded = True
    rows = flat.shape[0] // _LANE
    x2d = flat.reshape(rows, _LANE)

    # Tile rows: full-array block for small inputs (always layout-legal),
    # otherwise 1024-row blocks (multiple of 8; ragged edge masked by Pallas).
    tile_rows = rows if rows <= _TILE_ROWS else _TILE_ROWS
    grid = (pl.cdiv(rows, tile_rows),)

    seed_arr = jnp.asarray([seed], dtype=jnp.int32)

    out2d = pl.pallas_call(
        partial(_gaussian_noise_kernel, std=float(std), tile_rows=tile_rows),
        out_shape=jax.ShapeDtypeStruct((rows, _LANE), orig_dtype),
        grid=grid,
        in_specs=[
            pl.BlockSpec(memory_space=pltpu.MemorySpace.SMEM),      # seed scalar
            pl.BlockSpec((tile_rows, _LANE), lambda i: (i, 0)),     # x row-tile
        ],
        out_specs=pl.BlockSpec((tile_rows, _LANE), lambda i: (i, 0)),
        compiler_params=pltpu.CompilerParams(
            dimension_semantics=("parallel",),      # shard row-tiles across TCs (v7x)
            vmem_limit_bytes=32 * 1024 * 1024,
        ),
    )(seed_arr, x2d)

    if padded:
        return out2d.reshape(-1)[:n].reshape(orig_shape)
    return out2d.reshape(orig_shape)


if __name__ == "__main__":
    # Module config: GaussianNoise(batch_size=2, input_shape=(4, 16, 16), std=0.1)
    batch_size = 2
    input_shape = (4, 16, 16)
    std = 0.1

    key = jax.random.PRNGKey(0)
    x = jax.random.normal(key, (batch_size,) + input_shape, dtype=jnp.float32)

    out = gaussian_noise(x, seed=1234, std=std)
    out = jax.block_until_ready(out)

    assert out.shape == x.shape and out.dtype == x.dtype
    assert bool(jnp.all(jnp.isfinite(out)))
    resid = out - x
    resid_std = float(jnp.std(resid))
    assert 0.03 < resid_std < 0.3, resid_std         # noise std should be ~0.1
    assert abs(float(jnp.mean(resid))) < 0.03        # noise mean should be ~0

    print("KERNEL_OK")
</pallas_src>

<mosaic_0001>
module attributes {stable_mosaic.version = 11 : i64} {
  func.func @_gaussian_noise_kernel(%arg0: i32, %arg1: memref<1xi32, #tpu.memory_space<smem>>, %arg2: memref<16x128xf32, #tpu.memory_space<vmem>>, %arg3: memref<16x128xf32, #tpu.memory_space<vmem>>) attributes {dimension_semantics = [#tpu.dimension_semantics<parallel>], iteration_bounds = array<i64: 1>, scalar_prefetch = 0 : i64, scratch_operands = 0 : i64, tpu.core_type = #tpu.core_type<tc>, window_params = [{transform_indices = @transform_0, window_bounds = array<i64: 1>}, {transform_indices = @transform_1, window_bounds = array<i64: 16, 128>}, {transform_indices = @transform_2, window_bounds = array<i64: 16, 128>}]} {
    %0 = tpu.iota {dimensions = array<i32: 0>} : vector<16x128xi32>
    %1 = tpu.iota {dimensions = array<i32: 1>} : vector<16x128xi32>
    %c16_i32 = arith.constant 16 : i32
    %2 = arith.muli %arg0, %c16_i32 : i32
    %3 = vector.broadcast %2 : i32 to vector<16x128xi32>
    %4 = arith.addi %3, %0 : vector<16x128xi32>
    %c128_i32 = arith.constant 128 : i32
    %5 = vector.broadcast %c128_i32 : i32 to vector<16x128xi32>
    %6 = arith.muli %4, %5 : vector<16x128xi32>
    %7 = arith.addi %6, %1 : vector<16x128xi32>
    %c0 = arith.constant 0 : index
    %8 = memref.load %arg1[%c0] : memref<1xi32, #tpu.memory_space<smem>>
    %c-1640531527_i32 = arith.constant -1640531527 : i32
    %9 = arith.muli %8, %c-1640531527_i32 : i32
    %10 = vector.broadcast %9 : i32 to vector<16x128xi32>
    %11 = arith.addi %7, %10 : vector<16x128xi32>
    %c16_i32_0 = arith.constant 16 : i32
    %12 = vector.broadcast %c16_i32_0 : i32 to vector<16x128xi32>
    %13 = arith.shrui %11, %12 : vector<16x128xi32>
    %14 = arith.xori %11, %13 : vector<16x128xi32>
    %c2146121005_i32 = arith.constant 2146121005 : i32
    %15 = vector.broadcast %c2146121005_i32 : i32 to vector<16x128xi32>
    %16 = arith.muli %14, %15 : vector<16x128xi32>
    %c15_i32 = arith.constant 15 : i32
    %17 = vector.broadcast %c15_i32 : i32 to vector<16x128xi32>
    %18 = arith.shrui %16, %17 : vector<16x128xi32>
    %19 = arith.xori %16, %18 : vector<16x128xi32>
    %c-2073254261_i32 = arith.constant -2073254261 : i32
    %20 = vector.broadcast %c-2073254261_i32 : i32 to vector<16x128xi32>
    %21 = arith.muli %19, %20 : vector<16x128xi32>
    %c16_i32_1 = arith.constant 16 : i32
    %22 = vector.broadcast %c16_i32_1 : i32 to vector<16x128xi32>
    %23 = arith.shrui %21, %22 : vector<16x128xi32>
    %24 = arith.xori %21, %23 : vector<16x128xi32>
    %25 = vector.broadcast %9 : i32 to vector<16x128xi32>
    %26 = arith.addi %7, %25 : vector<16x128xi32>
    %c2135587861_i32 = arith.constant 2135587861 : i32
    %27 = vector.broadcast %c2135587861_i32 : i32 to vector<16x128xi32>
    %28 = arith.addi %26, %27 : vector<16x128xi32>
    %c16_i32_2 = arith.constant 16 : i32
    %29 = vector.broadcast %c16_i32_2 : i32 to vector<16x128xi32>
    %30 = arith.shrui %28, %29 : vector<16x128xi32>
    %31 = arith.xori %28, %30 : vector<16x128xi32>
    %c2146121005_i32_3 = arith.constant 2146121005 : i32
    %32 = vector.broadcast %c2146121005_i32_3 : i32 to vector<16x128xi32>
    %33 = arith.muli %31, %32 : vector<16x128xi32>
    %c15_i32_4 = arith.constant 15 : i32
    %34 = vector.broadcast %c15_i32_4 : i32 to vector<16x128xi32>
    %35 = arith.shrui %33, %34 : vector<16x128xi32>
    %36 = arith.xori %33, %35 : vector<16x128xi32>
    %c-2073254261_i32_5 = arith.constant -2073254261 : i32
    %37 = vector.broadcast %c-2073254261_i32_5 : i32 to vector<16x128xi32>
    %38 = arith.muli %36, %37 : vector<16x128xi32>
    %c16_i32_6 = arith.constant 16 : i32
    %39 = vector.broadcast %c16_i32_6 : i32 to vector<16x128xi32>
    %40 = arith.shrui %38, %39 : vector<16x128xi32>
    %41 = arith.xori %38, %40 : vector<16x128xi32>
    %c8_i32 = arith.constant 8 : i32
    %42 = vector.broadcast %c8_i32 : i32 to vector<16x128xi32>
    %43 = arith.shrui %24, %42 : vector<16x128xi32>
    %44 = arith.sitofp %43 : vector<16x128xi32> to vector<16x128xf32>
    %cst = arith.constant 1.000000e+00 : f32
    %45 = vector.broadcast %cst : f32 to vector<16x128xf32>
    %46 = arith.addf %44, %45 : vector<16x128xf32>
    %cst_7 = arith.constant 5.96046448E-8 : f32
    %47 = vector.broadcast %cst_7 : f32 to vector<16x128xf32>
    %48 = arith.mulf %46, %47 : vector<16x128xf32>
    %c8_i32_8 = arith.constant 8 : i32
    %49 = vector.broadcast %c8_i32_8 : i32 to vector<16x128xi32>
    %50 = arith.shrui %41, %49 : vector<16x128xi32>
    %51 = arith.sitofp %50 : vector<16x128xi32> to vector<16x128xf32>
    %cst_9 = arith.constant 0.000000e+00 : f32
    %52 = vector.broadcast %cst_9 : f32 to vector<16x128xf32>
    %53 = arith.addf %51, %52 : vector<16x128xf32>
    %cst_10 = arith.constant 5.96046448E-8 : f32
    %54 = vector.broadcast %cst_10 : f32 to vector<16x128xf32>
    %55 = arith.mulf %53, %54 : vector<16x128xf32>
    %56 = math.log %48 : vector<16x128xf32>
    %cst_11 = arith.constant -2.000000e+00 : f32
    %57 = vector.broadcast %cst_11 : f32 to vector<16x128xf32>
    %58 = arith.mulf %57, %56 : vector<16x128xf32>
    %59 = math.sqrt %58 : vector<16x128xf32>
    %cst_12 = arith.constant 6.28318548 : f32
    %60 = vector.broadcast %cst_12 : f32 to vector<16x128xf32>
    %61 = arith.mulf %60, %55 : vector<16x128xf32>
    %62 = math.cos %61 : vector<16x128xf32>
    %63 = arith.mulf %59, %62 : vector<16x128xf32>
    %cst_13 = arith.constant 1.000000e-01 : f32
    %64 = vector.broadcast %cst_13 : f32 to vector<16x128xf32>
    %65 = arith.mulf %63, %64 : vector<16x128xf32>
    %c0_14 = arith.constant 0 : index
    %c0_15 = arith.constant 0 : index
    %66 = vector.load %arg2[%c0_14, %c0_15] : memref<16x128xf32, #tpu.memory_space<vmem>>, vector<16x128xf32>
    %67 = arith.addf %66, %65 : vector<16x128xf32>
    %c0_16 = arith.constant 0 : index
    %c0_17 = arith.constant 0 : index
    %68 = vector.load %arg3[%c0_16, %c0_17] : memref<16x128xf32, #tpu.memory_space<vmem>>, vector<16x128xf32>
    tpu.vector_store %arg3[%c0_16, %c0_17], %67 {strides = array<i32>} : memref<16x128xf32, #tpu.memory_space<vmem>>, vector<16x128xf32>,
    return
  }
  func.func @transform_0(%arg0: i32) -> i32 {
    %c0_i32 = arith.constant 0 : i32
    %c0_i32_0 = arith.constant 0 : i32
    return %c0_i32 : i32
  }
  func.func @transform_1(%arg0: i32) -> (i32, i32) {
    %c0_i32 = arith.constant 0 : i32
    %c0_i32_0 = arith.constant 0 : i32
    return %arg0, %c0_i32 : i32, i32
  }
  func.func @transform_2(%arg0: i32) -> (i32, i32) {
    %c0_i32 = arith.constant 0 : i32
    %c0_i32_0 = arith.constant 0 : i32
    return %arg0, %c0_i32 : i32, i32
  }
}

</mosaic_0001>

<llo_original>
// kernel: tpu_custom_call.1
$region0: #{tpu_custom_call.1}
  #allocation0 [shape = 'u32[]', space=smem, size = 0x4, offset = 0x4, fixed_abs, tag = 'smem constant byte address 0x4 - core index']
  #allocation1 [shape = 'u32[144,128]{1,0:T(1,128)}', space=vmem, size = 0x12000, scoped, tag = 'internal scratch']
  #allocation2 [shape = 's32[1]{0:T(128)S(6)}', space=smem, size = 0x200, scoped, tag = 'scoped memory for tpu_custom_call.1']
  %s0 = inlined_call_operand.<no memory space> [shape: s32[1], index: 0, kind: input, shape index: {}]
  %s1 = inlined_call_operand.hbm [shape: f32[16,128], index: 1, kind: input, shape index: {}]
  %s2 = inlined_call_operand.hbm [shape: f32[16,128], index: 2, kind: output, shape index: {}]
  %s3 = sld [smem:[#allocation0]]
  $region22: #{tpu_custom_call.1} parent=0
    _
  %s5 = ssub.s32 1, %s3
  %s6 = scalar_select 0, %s5, %s3
  %7 = sst [smem:[#allocation2]] %s0
  $region1: #{tpu_custom_call.1} parent=0
    #allocation3 [shape = 'u8[8192]{0}', space=vmem, size = 0x2000, scoped, tag = 'input window, operand 1, single buffered']
    #allocation4 [shape = 's32[1]{0}', space=sflag, size = 0x4, scoped, tag = 'scoped memory for tpu_custom_call.1']
    #allocation5 [shape = 's32[1]{0}', space=sflag, size = 0x4, scoped, tag = 'scoped memory for tpu_custom_call.1']
    #allocation6 [shape = 'u8[8192]{0}', space=vmem, size = 0x2000, scoped, tag = 'output window, operand 0, single buffered']
    %8 = vsyncpa [#allocation4], 0
    %9 = vsyncpa [#allocation5], 0
    // Predicated region
    $region2: #{tpu_custom_call.1} parent=1 // pred_check
      _
    $region3: #{tpu_custom_call.1} parent=1 // pred_check_branch
      %11 = sbr.rel (0) target = $region5
    $region4: #{tpu_custom_call.1} parent=1 // pred_region
      _
    $region5: #{tpu_custom_call.1} parent=1 // pred_fallthru
      _
    // Predicated region
    $region6: #{tpu_custom_call.1} parent=1 // pred_check
      _
    $region7: #{tpu_custom_call.1} parent=1 // pred_check_branch
      %13 = sbr.rel (0) target = $region9
    $region8: #{tpu_custom_call.1} parent=1 // pred_region
      %s15 = ssub.s32 256, 256
      %16 = vsyncadd [#allocation4], %s15
      %s17 = sshll.u32 [#allocation3], 4
      %s18 = int_to_ptr.vmem [resolvable:$true] %s17
      %23 = dma.hbm_to_vmem [thread:$0]  %s1, 256, %s18, [#allocation4], 128, 128, 8
    $region9: #{tpu_custom_call.1} parent=1 // pred_fallthru
      _
    // Predicated region
    $region10: #{tpu_custom_call.1} parent=1 // pred_check
      _
    $region11: #{tpu_custom_call.1} parent=1 // pred_check_branch
      %25 = sbr.rel (0) target = $region13
    $region12: #{tpu_custom_call.1} parent=1 // pred_region
      %26 = dma.done [#allocation4], 256
    $region13: #{tpu_custom_call.1} parent=1 // pred_fallthru
      _
    %v27 = vlaneseq
    %v28 = vshrl.u32 %v27, 7
    %v29 = vadd.s32 %v28, 8
    %v30 = vlaneseq
    %v31 = vand.u32 %v30, 127
    %s32 = smul.u32 0, 16
    %v33 = vstv %s32
    %v34 = vadd.s32 %v33, %v28
    %v35 = vadd.s32 %v33, %v29
    %v36 = vmul.u32 %v34, 128
    %v37 = vmul.u32 %v35, 128
    %v38 = vadd.s32 %v36, %v31
    %v39 = vadd.s32 %v37, %v31
    %s40 = sld [smem:[#allocation2]]
    %s41 = smul.u32 %s40, 2654435769
    %v42 = vstv %s41
    %v43 = vadd.s32 %v38, %v42
    %v44 = vadd.s32 %v39, %v42
    %v45 = vshrl.u32 %v43, 16
    %v46 = vshrl.u32 %v44, 16
    %v47 = vxor.u32 %v43, %v45
    %v48 = vxor.u32 %v44, %v46
    %v49 = vmul.u32 %v47, 2146121005
    %v50 = vmul.u32 %v48, 2146121005
    %v51 = vshrl.u32 %v49, 15
    %v52 = vshrl.u32 %v50, 15
    %v53 = vxor.u32 %v49, %v51
    %v54 = vxor.u32 %v50, %v52
    %v55 = vmul.u32 %v53, 2221713035
    %v56 = vmul.u32 %v54, 2221713035
    %v57 = vshrl.u32 %v55, 16
    %v58 = vshrl.u32 %v56, 16
    %v59 = vxor.u32 %v55, %v57
    %v60 = vxor.u32 %v56, %v58
    %v61 = vadd.s32 %v43, 2135587861
    %v62 = vadd.s32 %v44, 2135587861
    %v63 = vshrl.u32 %v61, 16
    %v64 = vshrl.u32 %v62, 16
    %v65 = vxor.u32 %v61, %v63
    %v66 = vxor.u32 %v62, %v64
    %v67 = vmul.u32 %v65, 2146121005
    %v68 = vmul.u32 %v66, 2146121005
    %v69 = vshrl.u32 %v67, 15
    %v70 = vshrl.u32 %v68, 15
    %v71 = vxor.u32 %v67, %v69
    %v72 = vxor.u32 %v68, %v70
    %v73 = vmul.u32 %v71, 2221713035
    %v74 = vmul.u32 %v72, 2221713035
    %v75 = vshrl.u32 %v73, 16
    %v76 = vshrl.u32 %v74, 16
    %v77 = vxor.u32 %v73, %v75
    %v78 = vxor.u32 %v74, %v76
    %v79 = vshrl.u32 %v59, 8
    %v80 = vshrl.u32 %v60, 8
    %v81 = vcvt.s32.f32 %v79
    %v82 = vcvt.s32.f32 %v80
    %v83 = vadd.f32 %v81, 1.0
    %v84 = vadd.f32 %v82, 1.0
    %v85 = vmul.f32 %v83, 5.9604645e-08
    %v86 = vmul.f32 %v84, 5.9604645e-08
    %v87 = vshrl.u32 %v77, 8
    %v88 = vshrl.u32 %v78, 8
    %v89 = vcvt.s32.f32 %v87
    %v90 = vcvt.s32.f32 %v88
    %v91 = vadd.f32 %v89, 0.0
    %v92 = vadd.f32 %v90, 0.0
    %v93 = vmul.f32 %v91, 5.9604645e-08
    %v94 = vmul.f32 %v92, 5.9604645e-08
    %v95 = vlog2.pop %v85
    %v96 = vmul.f32 %v95, 0.6931472
    %v97 = vlog2.pop %v86
    %v98 = vmul.f32 %v97, 0.6931472
    %v99 = vmul.f32 %v96, -2.0
    %v100 = vmul.f32 %v98, -2.0
    %v101 = vrsqrt.pop %v99
    %v102 = vmul.f32 %v99, %v101
    %vm103 = vcmp.eq.f32.partialorder %v99, inf
    %v104 = vsel %vm103, %v99, %v102
    %vm105 = vcmp.eq.f32.partialorder %v99, 0.0
    %v106 = vand.u32 %v99, 2147483648
    %v107 = vsel %vm105, %v106, %v104
    %v108 = vrsqrt.pop %v100
    %v109 = vmul.f32 %v100, %v108
    %vm110 = vcmp.eq.f32.partialorder %v100, inf
    %v111 = vsel %vm110, %v100, %v109
    %vm112 = vcmp.eq.f32.partialorder %v100, 0.0
    %v113 = vand.u32 %v100, 2147483648
    %v114 = vsel %vm112, %v113, %v111
    %v115 = vmul.f32 %v93, 6.2831855
    %v116 = vmul.f32 %v94, 6.2831855
    %v117 = vand.u32 2147483647, %v115
    %vm118 = vcmp.le.f32.partialorder %v117, 0.7853982
    %vm119 = vcmp.lt.s32.totalorder %v115, 0
    %v120 = vand.u32 %v115, 2139095040
    %v121 = vshrl.u32 %v120, 23
    %v122 = vsub.s32 %v121, 127
    %v123 = vand.u32 2147483647, %v115
    %v124 = vand.u32 %v123, 8388607
    %v125 = vor.u32 %v124, 8388608
    %v126 = vsub.s32 0, %v125
    %v127 = vadd.s32 %v122, 1
    %vm128 = vcmp.gt.s32.totalorder %v127, 0
    %v129 = vsel %vm128, %v127, 0
    %v130 = vshrl.u32 %v129, 5
    %v131 = vand.u32 %v129, 31
    %v132 = vsub.s32 32, %v131
    %v133 = vshrl.u32 683565275, %v132
    %v134 = vshll.u32 683565275, %v131
    %v135 = vshrl.u32 2475754826, %v132
    %v136 = vor.u32 %v134, %v135
    %v137 = vshll.u32 2475754826, %v131
    %v138 = vshrl.u32 2131351028, %v132
    %v139 = vor.u32 %v137, %v138
    %v140 = vshll.u32 2131351028, %v131
    %v141 = vshrl.u32 2102212464, %v132
    %v142 = vor.u32 %v140, %v141
    %v143 = vshll.u32 2102212464, %v131
    %v144 = vshrl.u32 920167782, %v132
    %v145 = vor.u32 %v143, %v144
    %v146 = vshll.u32 920167782, %v131
    %v147 = vshrl.u32 1326507024, %v132
    %v148 = vor.u32 %v146, %v147
    %vm149 = vcmp.lt.s32.totalorder %v130, 1
    %vm150 = vcmp.lt.s32.totalorder %v130, 2
    %vm151 = vcmp.lt.s32.totalorder %v130, 3
    %vm152 = vcmp.lt.s32.totalorder %v130, 4
    %v153 = vsel %vm149, %v133, %v136
    %v154 = vsel %vm152, %v142, 2102212464
    %v155 = vsel %vm151, %v139, %v154
    %v156 = vsel %vm150, %v153, %v155
    %v157 = vsel %vm149, %v136, %v139
    %v158 = vsel %vm152, %v145, 920167782
    %v159 = vsel %vm151, %v142, %v158
    %v160 = vsel %vm150, %v157, %v159
    %v161 = vsel %vm149, %v139, %v142
    %v162 = vsel %vm152, %v148, 1326507024
    %v163 = vsel %vm151, %v145, %v162
    %v164 = vsel %vm150, %v161, %v163
    %v165 = vshll.u32 %v125, 8
    %v166 = vmul.u32.u64.compose %v165, %v164
    %v167 = vextract.low.u32 %v166
    %v168 = vextract.high.u32 %v166
    %v169 = vmul.u32.u64.compose %v165, %v160
    %v170 = vextract.low.u32 %v169
    %v171 = vextract.high.u32 %v169
    %v172 = vmul.u32 %v165, %v156
    %v173 = vadd.s32 %v168, %v170
    %vm174 = vc.u32 %v168, %v170
    %v175 = vadd.s32 %v171, 1
    %v176 = vsel %vm174, %v175, %v171
    %v177 = vadd.s32 %v172, %v176
    %v178 = vadd.s32 %v177, 536870912
    %v179 = vshrl.u32 %v178, 30
    %v180 = vshll.u32 %v179, 30
    %v181 = vsub.s32 %v177, %v180
    %vm182 = vcmp.lt.s32.totalorder %v181, 0
    %v183 = vsub.s32 0, %v181
    %v184 = vsel %vm182, %v183, %v181
    %v185 = vclz %v184
    %v186 = vsub.s32 %v185, 2
    %vm187 = vcmp.gt.s32.totalorder 0, %v186
    %v188 = vsel %vm187, 0, %v186
    %v189 = vsub.s32 32, %v188
    %v190 = vshll.u32 %v181, %v188
    %v191 = vshrl.u32 %v173, %v189
    %v192 = vor.u32 %v190, %v191
    %v193 = vsub.s32 4294967266, %v188
    %v194 = vadd.s32 %v193, 127
    %v195 = vshll.u32 %v194, 23
    %v196 = vor.u32 4788187, %v195
    %v197 = vand.u32 2147483647, %v196
    %v199 = vcvt.s32.f32 %v192
    %v200 = vmul.f32 %v199, %v197
    %v201 = vxor.u32 %v200, 2147483648
    %v202 = vsel %vm119, %v201, %v200
    %v203 = vsub.s32 4, %v179
    %v204 = vsel %vm119, %v203, %v179
    %v205 = vsel %vm118, %v115, %v202
    %v206 = vsel %vm118, 0, %v204
    %v207 = vcosq.f32.pop %v205
    %v208 = vsinq.f32.pop %v205
    %vm209 = vweird.f32 %v115
    %v210 = vand.u32 %v206, 3
    %vm211 = vcmp.lt.s32.totalorder %v210, 2
    %vm212 = vcmp.eq.s32.totalorder %v210, 0
    %v213 = vxor.u32 %v208, 2147483648
    %v214 = vsel %vm212, %v207, %v213
    %vm215 = vcmp.eq.s32.totalorder %v210, 2
    %v216 = vxor.u32 %v207, 2147483648
    %v217 = vsel %vm215, %v216, %v208
    %v218 = vsel %vm211, %v214, %v217
    %v219 = vsel %vm209, nan, %v218
    %v220 = vand.u32 2147483647, %v116
    %vm221 = vcmp.le.f32.partialorder %v220, 0.7853982
    %vm222 = vcmp.lt.s32.totalorder %v116, 0
    %v223 = vand.u32 %v116, 2139095040
    %v224 = vshrl.u32 %v223, 23
    %v225 = vsub.s32 %v224, 127
    %v226 = vand.u32 2147483647, %v116
    %v227 = vand.u32 %v226, 8388607
    %v228 = vor.u32 %v227, 8388608
    %v229 = vsub.s32 0, %v228
    %v230 = vadd.s32 %v225, 1
    %vm231 = vcmp.gt.s32.totalorder %v230, 0
    %v232 = vsel %vm231, %v230, 0
    %v233 = vshrl.u32 %v232, 5
    %v234 = vand.u32 %v232, 31
    %v235 = vsub.s32 32, %v234
    %v236 = vshrl.u32 683565275, %v235
    %v237 = vshll.u32 683565275, %v234
    %v238 = vshrl.u32 2475754826, %v235
    %v239 = vor.u32 %v237, %v238
    %v240 = vshll.u32 2475754826, %v234
    %v241 = vshrl.u32 2131351028, %v235
    %v242 = vor.u32 %v240, %v241
    %v243 = vshll.u32 2131351028, %v234
    %v244 = vshrl.u32 2102212464, %v235
    %v245 = vor.u32 %v243, %v244
    %v246 = vshll.u32 2102212464, %v234
    %v247 = vshrl.u32 920167782, %v235
    %v248 = vor.u32 %v246, %v247
    %v249 = vshll.u32 920167782, %v234
    %v250 = vshrl.u32 1326507024, %v235
    %v251 = vor.u32 %v249, %v250
    %vm252 = vcmp.lt.s32.totalorder %v233, 1
    %vm253 = vcmp.lt.s32.totalorder %v233, 2
    %vm254 = vcmp.lt.s32.totalorder %v233, 3
    %vm255 = vcmp.lt.s32.totalorder %v233, 4
    %v256 = vsel %vm252, %v236, %v239
    %v257 = vsel %vm255, %v245, 2102212464
    %v258 = vsel %vm254, %v242, %v257
    %v259 = vsel %vm253, %v256, %v258
    %v260 = vsel %vm252, %v239, %v242
    %v261 = vsel %vm255, %v248, 920167782
    %v262 = vsel %vm254, %v245, %v261
    %v263 = vsel %vm253, %v260, %v262
    %v264 = vsel %vm252, %v242, %v245
    %v265 = vsel %vm255, %v251, 1326507024
    %v266 = vsel %vm254, %v248, %v265
    %v267 = vsel %vm253, %v264, %v266
    %v268 = vshll.u32 %v228, 8
    %v269 = vmul.u32.u64.compose %v268, %v267
    %v270 = vextract.low.u32 %v269
    %v271 = vextract.high.u32 %v269
    %v272 = vmul.u32.u64.compose %v268, %v263
    %v273 = vextract.low.u32 %v272
    %v274 = vextract.high.u32 %v272
    %v275 = vmul.u32 %v268, %v259
    %v276 = vadd.s32 %v271, %v273
    %vm277 = vc.u32 %v271, %v273
    %v278 = vadd.s32 %v274, 1
    %v279 = vsel %vm277, %v278, %v274
    %v280 = vadd.s32 %v275, %v279
    %v281 = vadd.s32 %v280, 536870912
    %v282 = vshrl.u32 %v281, 30
    %v283 = vshll.u32 %v282, 30
    %v284 = vsub.s32 %v280, %v283
    %vm285 = vcmp.lt.s32.totalorder %v284, 0
    %v286 = vsub.s32 0, %v284
    %v287 = vsel %vm285, %v286, %v284
    %v288 = vclz %v287
    %v289 = vsub.s32 %v288, 2
    %vm290 = vcmp.gt.s32.totalorder 0, %v289
    %v291 = vsel %vm290, 0, %v289
    %v292 = vsub.s32 32, %v291
    %v293 = vshll.u32 %v284, %v291
    %v294 = vshrl.u32 %v276, %v292
    %v295 = vor.u32 %v293, %v294
    %v296 = vsub.s32 4294967266, %v291
    %v297 = vadd.s32 %v296, 127
    %v298 = vshll.u32 %v297, 23
    %v299 = vor.u32 4788187, %v298
    %v300 = vand.u32 2147483647, %v299
    %v302 = vcvt.s32.f32 %v295
    %v303 = vmul.f32 %v302, %v300
    %v304 = vxor.u32 %v303, 2147483648
    %v305 = vsel %vm222, %v304, %v303
    %v306 = vsub.s32 4, %v282
    %v307 = vsel %vm222, %v306, %v282
    %v308 = vsel %vm221, %v116, %v305
    %v309 = vsel %vm221, 0, %v307
    %v310 = vcosq.f32.pop %v308
    %v311 = vsinq.f32.pop %v308
    %vm312 = vweird.f32 %v116
    %v313 = vand.u32 %v309, 3
    %vm314 = vcmp.lt.s32.totalorder %v313, 2
    %vm315 = vcmp.eq.s32.totalorder %v313, 0
    %v316 = vxor.u32 %v311, 2147483648
    %v317 = vsel %vm315, %v310, %v316
    %vm318 = vcmp.eq.s32.totalorder %v313, 2
    %v319 = vxor.u32 %v310, 2147483648
    %v320 = vsel %vm318, %v319, %v311
    %v321 = vsel %vm314, %v317, %v320
    %v322 = vsel %vm312, nan, %v321
    %v323 = vmul.f32 %v107, %v219
    %v324 = vmul.f32 %v114, %v322
    %v325 = vmul.f32 %v323, 0.1
    %v326 = vmul.f32 %v324, 0.1
    %v327 = vld [vmem:[#allocation3] sm:$0xff]
    %v328 = vld [vmem:[#allocation3 + $0x8] sm:$0xff]
    %v329 = vadd.f32 %v327, %v325
    %v330 = vadd.f32 %v328, %v326
    %331 = vst [vmem:[#allocation6] sm:$0xff] %v329
    %332 = vst [vmem:[#allocation6 + $0x8] sm:$0xff] %v330
    // Predicated region
    $region14: #{tpu_custom_call.1} parent=1 // pred_check
      _
    $region15: #{tpu_custom_call.1} parent=1 // pred_check_branch
      %334 = sbr.rel (0) target = $region17
    $region16: #{tpu_custom_call.1} parent=1 // pred_region
      %s336 = ssub.s32 256, 256
      %337 = vsyncadd [#allocation5], %s336
      %s338 = sshll.u32 [#allocation6], 4
      %s339 = int_to_ptr.vmem [resolvable:$true] %s338
      %344 = dma.vmem_to_hbm [thread:$0]  %s339, 256, %s2, [#allocation5], 128, 128, 8
    $region17: #{tpu_custom_call.1} parent=1 // pred_fallthru
      _
    // Predicated region
    $region18: #{tpu_custom_call.1} parent=1 // pred_check
      _
    $region19: #{tpu_custom_call.1} parent=1 // pred_check_branch
      %346 = sbr.rel (0) target = $region21
    $region20: #{tpu_custom_call.1} parent=1 // pred_region
      %347 = dma.done [#allocation5], 256
    $region21: #{tpu_custom_call.1} parent=1 // pred_fallthru
      _
    %348 = vsyncpa [#allocation4], 1
    %349 = vsyncpa [#allocation5], 1

</llo_original>
